<compile_context>
chip_gen: v6e
topology: v6e:2x2x1
jax: 0.10.0
libtpu: 0.0.40
codegen_flags: <defaults>
</compile_context>

<pallas_src>
import functools

import jax
import jax.numpy as jnp
from jax.experimental import pallas as pl
from jax.experimental.pallas import tpu as pltpu

_LANES = 128      # vreg lane width
_SUBLANES = 8     # vreg sublane width (f32)


def _round_up(x, m):
    return ((x + m - 1) // m) * m


@functools.lru_cache(maxsize=None)
def _tensorcores_per_chip():
    """v7x exposes 2 TensorCores per chip; v5e/v6e (and megacore chips) act as 1."""
    kind = getattr(jax.devices()[0], "device_kind", "").lower()
    return 2 if "v7" in kind else 1


def _mlp_readout_kernel(x_ref, w0_ref, b0_ref, w1_ref, b1_ref, w2_ref, b2_ref,
                        o_ref):
    """Fused 3-layer MLP: relu(relu(x@W0+b0)@W1+b1)@W2+b2, all f32."""
    # Layer 0: Linear + ReLU
    y = jnp.dot(x_ref[...], w0_ref[...], preferred_element_type=jnp.float32)
    y = jnp.maximum(y + b0_ref[...], 0.0)

    # Layer 1: Linear + ReLU
    y = jnp.dot(y, w1_ref[...], preferred_element_type=jnp.float32)
    y = jnp.maximum(y + b1_ref[...], 0.0)

    # Layer 2 (final): Linear, no activation
    y = jnp.dot(y, w2_ref[...], preferred_element_type=jnp.float32)
    o_ref[...] = (y + b2_ref[...]).astype(o_ref.dtype)


@functools.partial(jax.jit, static_argnames=("batch_tile", "tc_count"))
def _mlp_readout_impl(x, w0, b0, w1, b1, w2, b2, *, batch_tile, tc_count):
    N, d0 = x.shape
    d1, d2, dout = w0.shape[1], w1.shape[1], w2.shape[1]

    # Biases as (1, d) f32 rows so they broadcast over the batch tile.
    w0 = w0.astype(jnp.float32)
    w1 = w1.astype(jnp.float32)
    w2 = w2.astype(jnp.float32)
    b0r = b0.reshape(1, d1).astype(jnp.float32)
    b1r = b1.reshape(1, d2).astype(jnp.float32)
    b2r = b2.reshape(1, dout).astype(jnp.float32)

    # ---- batch (M) tile selection --------------------------------------
    tb = min(batch_tile, N)
    if tb < N:
        # Tiled path: tile must be sublane-aligned (multiple of 8).
        tb = max(_SUBLANES, (tb // _SUBLANES) * _SUBLANES)
    elif tc_count >= 2 and N >= 2 * _SUBLANES:
        # v7x only: split the batch so both TensorCores get work.
        tb = _round_up(pl.cdiv(N, tc_count), _SUBLANES)
    # (v5e/v6e: 1 TC => keep a single grid step when the batch fits one tile.)
    grid = (pl.cdiv(N, tb),)

    # Full-extent (untiled) resident blocks for weights / biases.
    def const_spec(shape):
        return pl.BlockSpec(shape, lambda i: (0, 0))

    # ---- cost estimate (HBM-traffic & FLOP hints for XLA) ---------------
    flops = 2 * N * (d0 * d1 + d1 * d2 + d2 * dout)
    bytes_accessed = 4 * (N * d0                                  # x (f32)
                          + d0 * d1 + d1 * d2 + d2 * dout         # weights
                          + d1 + d2 + dout                        # biases
                          + N * dout)                             # output

    # ---- VMEM budget (lane/sublane-padded buffer sizes, double-buffered) -
    def _pad_rc(r, c):
        return _round_up(r, _SUBLANES) * _round_up(c, _LANES)

    w_elems = (_pad_rc(d0, d1) + _pad_rc(d1, d2) + _pad_rc(d2, dout)
               + _pad_rc(1, d1) + _pad_rc(1, d2) + _pad_rc(1, dout))
    vmem_est = 4 * (2 * tb * _round_up(d0, _LANES)          # x tile x2
                    + 2 * tb * _round_up(dout, _LANES)      # out tile x2
                    + 2 * w_elems                           # resident weights
                    + 3 * tb * _round_up(max(d1, d2), _LANES))  # f32 intermediates
    vmem_limit = int(max(8 << 20, 2 * vmem_est))   # tight budget, small floor

    return pl.pallas_call(
        _mlp_readout_kernel,
        out_shape=jax.ShapeDtypeStruct((N, dout), x.dtype),
        grid_spec=pltpu.PrefetchScalarGridSpec(
            num_scalar_prefetch=0,
            grid=grid,
            in_specs=[
                pl.BlockSpec((tb, d0), lambda i: (i, 0)),   # x tile (unpadded f32)
                const_spec((d0, d1)),                       # W0 (resident)
                const_spec((1, d1)),                        # b0
                const_spec((d1, d2)),                       # W1
                const_spec((1, d2)),                        # b1
                const_spec((d2, dout)),                     # W2
                const_spec((1, dout)),                      # b2
            ],
            out_specs=pl.BlockSpec((tb, dout), lambda i: (i, 0)),
        ),
        compiler_params=pltpu.CompilerParams(
            dimension_semantics=("parallel",),
            vmem_limit_bytes=vmem_limit),
        cost_estimate=pl.CostEstimate(
            flops=flops, transcendentals=0, bytes_accessed=bytes_accessed),
    )(x.astype(jnp.float32), w0, b0r, w1, b1r, w2, b2r)


def mlp_readout(x, params, batch_tile=1024):
    """x: (N, input_dim) float32. params: list of (W, b) with W as (in, out)."""
    (w0, b0), (w1, b1), (w2, b2) = params
    return _mlp_readout_impl(x, w0, b0, w1, b1, w2, b2,
                             batch_tile=batch_tile,
                             tc_count=_tensorcores_per_chip())


def init_mlp_readout_params(key, input_dim, output_dim, L=2):
    """Layer l: (input_dim // 2**l) -> (input_dim // 2**(l+1)),
    final layer: (input_dim // 2**L) -> output_dim. W stored as (in, out)."""
    dims = [input_dim // (2 ** l) for l in range(L + 1)] + [output_dim]
    params = []
    for l in range(L + 1):
        din, dn = dims[l], dims[l + 1]
        key, kw, kb = jax.random.split(key, 3)
        bound = 1.0 / jnp.sqrt(din)   # mimic nn.Linear default uniform bound
        w = jax.random.uniform(kw, (din, dn), jnp.float32, -bound, bound)
        b = jax.random.uniform(kb, (dn,), jnp.float32, -bound, bound)
        params.append((w, b))
    return params


def mlp_readout_ref(x, params):
    """Pure-JAX f32 reference mirroring the PyTorch forward."""
    (w0, b0), (w1, b1), (w2, b2) = params
    hp = jax.lax.Precision.HIGHEST
    y = jnp.maximum(jnp.dot(x, w0, precision=hp) + b0, 0.0)
    y = jnp.maximum(jnp.dot(y, w1, precision=hp) + b1, 0.0)
    return jnp.dot(y, w2, precision=hp) + b2


if __name__ == "__main__":
    key = jax.random.PRNGKey(0)
    batch, input_dim, output_dim, L = 64, 32, 4, 2

    key, kx = jax.random.split(key)
    x = jax.random.normal(kx, (batch, input_dim), jnp.float32)
    params = init_mlp_readout_params(key, input_dim, output_dim, L=L)

    out = mlp_readout(x, params)
    out = jax.block_until_ready(out)

    ref = mlp_readout_ref(x, params)
    assert out.shape == (batch, output_dim), out.shape
    # f32 weights/activations with f32 MXU accumulation: tracks the f32
    # reference closely (tolerance covers any MXU operand rounding).
    assert jnp.allclose(out, ref, atol=2e-2, rtol=2e-2), (
        float(jnp.max(jnp.abs(out - ref))))

    print("KERNEL_OK")
</pallas_src>

<mosaic_0001>
module attributes {stable_mosaic.version = 11 : i64} {
  func.func @_mlp_readout_kernel(%arg0: i32, %arg1: memref<64x32xf32, #tpu.memory_space<vmem>>, %arg2: memref<32x16xf32, #tpu.memory_space<vmem>>, %arg3: memref<1x16xf32, #tpu.memory_space<vmem>>, %arg4: memref<16x8xf32, #tpu.memory_space<vmem>>, %arg5: memref<1x8xf32, #tpu.memory_space<vmem>>, %arg6: memref<8x4xf32, #tpu.memory_space<vmem>>, %arg7: memref<1x4xf32, #tpu.memory_space<vmem>>, %arg8: memref<64x4xf32, #tpu.memory_space<vmem>>) attributes {dimension_semantics = [#tpu.dimension_semantics<parallel>], iteration_bounds = array<i64: 1>, scalar_prefetch = 0 : i64, scratch_operands = 0 : i64, tpu.core_type = #tpu.core_type<tc>, window_params = [{transform_indices = @transform_0, window_bounds = array<i64: 64, 32>}, {pipeline_mode = #tpu.pipeline_mode<synchronous>, transform_indices = @transform_1, window_bounds = array<i64: 32, 16>}, {pipeline_mode = #tpu.pipeline_mode<synchronous>, transform_indices = @transform_2, window_bounds = array<i64: 1, 16>}, {pipeline_mode = #tpu.pipeline_mode<synchronous>, transform_indices = @transform_3, window_bounds = array<i64: 16, 8>}, {pipeline_mode = #tpu.pipeline_mode<synchronous>, transform_indices = @transform_4, window_bounds = array<i64: 1, 8>}, {pipeline_mode = #tpu.pipeline_mode<synchronous>, transform_indices = @transform_5, window_bounds = array<i64: 8, 4>}, {pipeline_mode = #tpu.pipeline_mode<synchronous>, transform_indices = @transform_6, window_bounds = array<i64: 1, 4>}, {transform_indices = @transform_7, window_bounds = array<i64: 64, 4>}]} {
    %c0 = arith.constant 0 : index
    %c0_0 = arith.constant 0 : index
    %0 = vector.load %arg1[%c0, %c0_0] : memref<64x32xf32, #tpu.memory_space<vmem>>, vector<64x32xf32>
    %c0_1 = arith.constant 0 : index
    %c0_2 = arith.constant 0 : index
    %1 = vector.load %arg2[%c0_1, %c0_2] : memref<32x16xf32, #tpu.memory_space<vmem>>, vector<32x16xf32>
    %cst = arith.constant dense<0.000000e+00> : vector<64x16xf32>
    %2 = tpu.matmul %0, %1, %cst {dimension_numbers = #tpu.dot_dimension_numbers<[1], [0], [0], [1], [0, 0, 1, 1], [], []>} : vector<64x32xf32>, vector<32x16xf32>, vector<64x16xf32> -> vector<64x16xf32>
    %c0_3 = arith.constant 0 : index
    %c0_4 = arith.constant 0 : index
    %3 = vector.load %arg3[%c0_3, %c0_4] : memref<1x16xf32, #tpu.memory_space<vmem>>, vector<1x16xf32>
    %4 = vector.broadcast %3 : vector<1x16xf32> to vector<64x16xf32>
    %5 = arith.addf %2, %4 : vector<64x16xf32>
    %cst_5 = arith.constant 0.000000e+00 : f32
    %6 = vector.broadcast %cst_5 : f32 to vector<64x16xf32>
    %7 = arith.maximumf %5, %6 : vector<64x16xf32>
    %c0_6 = arith.constant 0 : index
    %c0_7 = arith.constant 0 : index
    %8 = vector.load %arg4[%c0_6, %c0_7] : memref<16x8xf32, #tpu.memory_space<vmem>>, vector<16x8xf32>
    %cst_8 = arith.constant dense<0.000000e+00> : vector<64x8xf32>
    %9 = tpu.matmul %7, %8, %cst_8 {dimension_numbers = #tpu.dot_dimension_numbers<[1], [0], [0], [1], [0, 0, 1, 1], [], []>} : vector<64x16xf32>, vector<16x8xf32>, vector<64x8xf32> -> vector<64x8xf32>
    %c0_9 = arith.constant 0 : index
    %c0_10 = arith.constant 0 : index
    %10 = vector.load %arg5[%c0_9, %c0_10] : memref<1x8xf32, #tpu.memory_space<vmem>>, vector<1x8xf32>
    %11 = vector.broadcast %10 : vector<1x8xf32> to vector<64x8xf32>
    %12 = arith.addf %9, %11 : vector<64x8xf32>
    %cst_11 = arith.constant 0.000000e+00 : f32
    %13 = vector.broadcast %cst_11 : f32 to vector<64x8xf32>
    %14 = arith.maximumf %12, %13 : vector<64x8xf32>
    %c0_12 = arith.constant 0 : index
    %c0_13 = arith.constant 0 : index
    %15 = vector.load %arg6[%c0_12, %c0_13] : memref<8x4xf32, #tpu.memory_space<vmem>>, vector<8x4xf32>
    %cst_14 = arith.constant dense<0.000000e+00> : vector<64x4xf32>
    %16 = tpu.matmul %14, %15, %cst_14 {dimension_numbers = #tpu.dot_dimension_numbers<[1], [0], [0], [1], [0, 0, 1, 1], [], []>} : vector<64x8xf32>, vector<8x4xf32>, vector<64x4xf32> -> vector<64x4xf32>
    %c0_15 = arith.constant 0 : index
    %c0_16 = arith.constant 0 : index
    %17 = vector.load %arg7[%c0_15, %c0_16] : memref<1x4xf32, #tpu.memory_space<vmem>>, vector<1x4xf32>
    %18 = vector.broadcast %17 : vector<1x4xf32> to vector<64x4xf32>
    %19 = arith.addf %16, %18 : vector<64x4xf32>
    %c0_17 = arith.constant 0 : index
    %c0_18 = arith.constant 0 : index
    %20 = vector.load %arg8[%c0_17, %c0_18] : memref<64x4xf32, #tpu.memory_space<vmem>>, vector<64x4xf32>
    tpu.vector_store %arg8[%c0_17, %c0_18], %19 {strides = array<i32>} : memref<64x4xf32, #tpu.memory_space<vmem>>, vector<64x4xf32>,
    return
  }
  func.func @transform_0(%arg0: i32) -> (i32, i32) {
    %c0_i32 = arith.constant 0 : i32
    %c0_i32_0 = arith.constant 0 : i32
    return %arg0, %c0_i32 : i32, i32
  }
  func.func @transform_1(%arg0: i32) -> (i32, i32) {
    %c0_i32 = arith.constant 0 : i32
    %c0_i32_0 = arith.constant 0 : i32
    %c0_i32_1 = arith.constant 0 : i32
    return %c0_i32, %c0_i32_0 : i32, i32
  }
  func.func @transform_2(%arg0: i32) -> (i32, i32) {
    %c0_i32 = arith.constant 0 : i32
    %c0_i32_0 = arith.constant 0 : i32
    %c0_i32_1 = arith.constant 0 : i32
    return %c0_i32, %c0_i32_0 : i32, i32
  }
  func.func @transform_3(%arg0: i32) -> (i32, i32) {
    %c0_i32 = arith.constant 0 : i32
    %c0_i32_0 = arith.constant 0 : i32
    %c0_i32_1 = arith.constant 0 : i32
    return %c0_i32, %c0_i32_0 : i32, i32
  }
  func.func @transform_4(%arg0: i32) -> (i32, i32) {
    %c0_i32 = arith.constant 0 : i32
    %c0_i32_0 = arith.constant 0 : i32
    %c0_i32_1 = arith.constant 0 : i32
    return %c0_i32, %c0_i32_0 : i32, i32
  }
  func.func @transform_5(%arg0: i32) -> (i32, i32) {
    %c0_i32 = arith.constant 0 : i32
    %c0_i32_0 = arith.constant 0 : i32
    %c0_i32_1 = arith.constant 0 : i32
    return %c0_i32, %c0_i32_0 : i32, i32
  }
  func.func @transform_6(%arg0: i32) -> (i32, i32) {
    %c0_i32 = arith.constant 0 : i32
    %c0_i32_0 = arith.constant 0 : i32
    %c0_i32_1 = arith.constant 0 : i32
    return %c0_i32, %c0_i32_0 : i32, i32
  }
  func.func @transform_7(%arg0: i32) -> (i32, i32) {
    %c0_i32 = arith.constant 0 : i32
    %c0_i32_0 = arith.constant 0 : i32
    return %arg0, %c0_i32 : i32, i32
  }
}

</mosaic_0001>

<llo_original>
// kernel: _mlp_readout_impl.1
$region0: #{_mlp_readout_impl.1}
  #allocation0 [shape = 'u32[]', space=smem, size = 0x4, offset = 0x4, fixed_abs, tag = 'smem constant byte address 0x4 - core index']
  #allocation1 [shape = 'u32[144,128]{1,0:T(1,128)}', space=vmem, size = 0x12000, scoped, tag = 'internal scratch']
  %s0 = inlined_call_operand.vmem [shape: f32[64,32], index: 0, kind: input, shape index: {}]
  %s1 = inlined_call_operand.vmem [shape: f32[32,16], index: 1, kind: input, shape index: {}]
  %s2 = inlined_call_operand.vmem [shape: f32[1,16], index: 2, kind: input, shape index: {}]
  %s3 = inlined_call_operand.vmem [shape: f32[16,8], index: 3, kind: input, shape index: {}]
  %s4 = inlined_call_operand.vmem [shape: f32[1,8], index: 4, kind: input, shape index: {}]
  %s5 = inlined_call_operand.vmem [shape: f32[8,4], index: 5, kind: input, shape index: {}]
  %s6 = inlined_call_operand.vmem [shape: f32[1,4], index: 6, kind: input, shape index: {}]
  %s7 = inlined_call_operand.vmem [shape: f32[64,4], index: 7, kind: output, shape index: {}]
  %s8 = sld [smem:[#allocation0]]
  $region38: #{_mlp_readout_impl.1} parent=0
    _
  %s10 = ssub.s32 1, %s8
  %s11 = scalar_select 0, %s10, %s8
  // Predicated region
  $region2: #{_mlp_readout_impl.1} parent=0 // pred_check
    _
  $region3: #{_mlp_readout_impl.1} parent=0 // pred_check_branch
    %13 = sbr.rel (0) target = $region5
  $region4: #{_mlp_readout_impl.1} parent=0 // pred_region
    _
  $region5: #{_mlp_readout_impl.1} parent=0 // pred_fallthru
    _
  // Predicated region
  $region6: #{_mlp_readout_impl.1} parent=0 // pred_check
    _
  $region7: #{_mlp_readout_impl.1} parent=0 // pred_check_branch
    %15 = sbr.rel (0) target = $region9
  $region8: #{_mlp_readout_impl.1} parent=0 // pred_region
    _
  $region9: #{_mlp_readout_impl.1} parent=0 // pred_fallthru
    _
  // Predicated region
  $region10: #{_mlp_readout_impl.1} parent=0 // pred_check
    _
  $region11: #{_mlp_readout_impl.1} parent=0 // pred_check_branch
    %17 = sbr.rel (0) target = $region13
  $region12: #{_mlp_readout_impl.1} parent=0 // pred_region
    _
  $region13: #{_mlp_readout_impl.1} parent=0 // pred_fallthru
    _
  // Predicated region
  $region14: #{_mlp_readout_impl.1} parent=0 // pred_check
    _
  $region15: #{_mlp_readout_impl.1} parent=0 // pred_check_branch
    %19 = sbr.rel (0) target = $region17
  $region16: #{_mlp_readout_impl.1} parent=0 // pred_region
    _
  $region17: #{_mlp_readout_impl.1} parent=0 // pred_fallthru
    _
  // Predicated region
  $region18: #{_mlp_readout_impl.1} parent=0 // pred_check
    _
  $region19: #{_mlp_readout_impl.1} parent=0 // pred_check_branch
    %21 = sbr.rel (0) target = $region21
  $region20: #{_mlp_readout_impl.1} parent=0 // pred_region
    _
  $region21: #{_mlp_readout_impl.1} parent=0 // pred_fallthru
    _
  // Predicated region
  $region22: #{_mlp_readout_impl.1} parent=0 // pred_check
    _
  $region23: #{_mlp_readout_impl.1} parent=0 // pred_check_branch
    %23 = sbr.rel (0) target = $region25
  $region24: #{_mlp_readout_impl.1} parent=0 // pred_region
    _
  $region25: #{_mlp_readout_impl.1} parent=0 // pred_fallthru
    _
  // Predicated region
  $region26: #{_mlp_readout_impl.1} parent=0 // pred_check
    _
  $region27: #{_mlp_readout_impl.1} parent=0 // pred_check_branch
    %25 = sbr.rel (0) target = $region29
  $region28: #{_mlp_readout_impl.1} parent=0 // pred_region
    _
  $region29: #{_mlp_readout_impl.1} parent=0 // pred_fallthru
    _
  %v26 = vld [vmem:[%s0] sm:$0xff]
  %v27 = vld [vmem:[%s0 + $0x8] sm:$0xff]
  %v28 = vld [vmem:[%s0 + $0x10] sm:$0xff]
  %v29 = vld [vmem:[%s0 + $0x18] sm:$0xff]
  %v30 = vld [vmem:[%s0 + $0x20] sm:$0xff]
  %v31 = vld [vmem:[%s0 + $0x28] sm:$0xff]
  %v32 = vld [vmem:[%s0 + $0x30] sm:$0xff]
  %v33 = vld [vmem:[%s0 + $0x38] sm:$0xff]
  %v34 = vld [vmem:[%s1] sm:$0xff]
  %v35 = vld [vmem:[%s1 + $0x8] sm:$0xff]
  %v36 = vld [vmem:[%s1 + $0x10] sm:$0xff]
  %v37 = vld [vmem:[%s1 + $0x18] sm:$0xff]
  %v38 = vld [vmem:[%s2] sm:$0x1]
  %v40 = vlaneseq
  %v41 = vshrl.u32 %v40, 7
  %v42 = vsub.s32 0, %v41
  %v43 = vrot.slane %v38, %v42
  %vm45 = vcmask 261120
  %v47 = vsel %vm45, %v26, 0
  %v50 = vsel %vm45, %v27, 0
  %v53 = vsel %vm45, %v28, 0
  %v56 = vsel %vm45, %v29, 0
  %v59 = vsel %vm45, %v30, 0
  %v62 = vsel %vm45, %v31, 0
  %v65 = vsel %vm45, %v32, 0
  %v68 = vsel %vm45, %v33, 0
  %70 = vmatprep.subr.mxu0 0.0
  %71 = vmatpush1.msra.mxu0 0.0
  %72 = vmatprep.subr.mxu0 0.0
  %73 = vmatpush1.msra.mxu0 0.0
  %74 = vmatprep.subr.mxu0 0.0
  %75 = vmatpush1.msra.mxu0 0.0
  %76 = vmatprep.subr.mxu0 0.0
  %77 = vmatpush1.msra.mxu0 0.0
  %78 = vmatprep.subr.mxu0 0.0
  %79 = vmatpush1.msra.mxu0 0.0
  %80 = vmatprep.subr.mxu0 0.0
  %81 = vmatpush1.msra.mxu0 0.0
  %82 = vmatprep.subr.mxu0 0.0
  %83 = vmatpush1.msra.mxu0 0.0
  %84 = vmatprep.subr.mxu0 0.0
  %85 = vmatpush1.msra.mxu0 0.0
  %86 = vmatprep.subr.mxu0 0.0
  %87 = vmatpush1.msra.mxu0 0.0
  %88 = vmatprep.subr.mxu0 0.0
  %89 = vmatpush1.msra.mxu0 0.0
  %90 = vmatprep.subr.mxu0 0.0
  %91 = vmatpush1.msra.mxu0 0.0
  %92 = vmatprep.subr.mxu0 0.0
  %93 = vmatpush1.msra.mxu0 0.0
  %94 = vmatprep.subr.mxu0 0.0
  %95 = vmatpush1.msra.mxu0 %v37
  %96 = vmatprep.subr.mxu0 0.0
  %97 = vmatpush1.msra.mxu0 %v36
  %98 = vmatprep.subr.mxu0 0.0
  %99 = vmatpush1.msra.mxu0 %v35
  %100 = vmatprep.subr.mxu0 0.0
  %101 = vmatpush1.msra.mxu0 %v34
  %102 = vmatprep.subr.mxu0 0.0
  %103 = vmatpush2.msra.mxu0 0.0
  %104 = vmatprep.subr.mxu0 0.0
  %105 = vmatpush2.msra.mxu0 0.0
  %106 = vmatprep.subr.mxu0 0.0
  %107 = vmatpush2.msra.mxu0 0.0
  %108 = vmatprep.subr.mxu0 0.0
  %109 = vmatpush2.msra.mxu0 0.0
  %110 = vmatprep.subr.mxu0 0.0
  %111 = vmatpush2.msra.mxu0 0.0
  %112 = vmatprep.subr.mxu0 0.0
  %113 = vmatpush2.msra.mxu0 0.0
  %114 = vmatprep.subr.mxu0 0.0
  %115 = vmatpush2.msra.mxu0 0.0
  %116 = vmatprep.subr.mxu0 0.0
  %117 = vmatpush2.msra.mxu0 0.0
  %118 = vmatprep.subr.mxu0 0.0
  %119 = vmatpush2.msra.mxu0 0.0
  %120 = vmatprep.subr.mxu0 0.0
  %121 = vmatpush2.msra.mxu0 0.0
  %122 = vmatprep.subr.mxu0 0.0
  %123 = vmatpush2.msra.mxu0 0.0
  %124 = vmatprep.subr.mxu0 0.0
  %125 = vmatpush2.msra.mxu0 0.0
  %126 = vmatprep.subr.mxu0 0.0
  %127 = vmatpush2.msra.mxu0 0.0
  %128 = vmatprep.subr.mxu0 0.0
  %129 = vmatpush2.msra.mxu0 0.0
  %130 = vmatprep.subr.mxu0 0.0
  %131 = vmatpush2.msra.mxu0 0.0
  %132 = vmatprep.subr.mxu0 0.0
  %133 = vmatpush2.msra.mxu0 0.0
  %134 = vmatprep.mubr.f32.mxu0 0.0
  %135 = vmatmul.mubr.f32.gmra.mxu0 %v47
  %v136 = vpop.f32.mrf.mxu0
  %v137 = vadd.f32 %v43, %v136
  %v138 = vpop.f32.mrf.mxu0
  %139 = vmatprep.mubr.f32.mxu0 0.0
  %140 = vmatmul.mubr.f32.gmra.mxu0 %v50
  %v141 = vpop.f32.mrf.mxu0
  %v142 = vadd.f32 %v43, %v141
  %v143 = vpop.f32.mrf.mxu0
  %144 = vmatprep.mubr.f32.mxu0 0.0
  %145 = vmatmul.mubr.f32.gmra.mxu0 %v53
  %v146 = vpop.f32.mrf.mxu0
  %v147 = vadd.f32 %v43, %v146
  %v148 = vpop.f32.mrf.mxu0
  %149 = vmatprep.mubr.f32.mxu0 0.0
  %150 = vmatmul.mubr.f32.gmra.mxu0 %v56
  %v151 = vpop.f32.mrf.mxu0
  %v152 = vadd.f32 %v43, %v151
  %v153 = vpop.f32.mrf.mxu0
  %154 = vmatprep.mubr.f32.mxu0 0.0
  %155 = vmatmul.mubr.f32.gmra.mxu0 %v59
  %v156 = vpop.f32.mrf.mxu0
  %v157 = vadd.f32 %v43, %v156
  %v158 = vpop.f32.mrf.mxu0
  %159 = vmatprep.mubr.f32.mxu0 0.0
  %160 = vmatmul.mubr.f32.gmra.mxu0 %v62
  %v161 = vpop.f32.mrf.mxu0
  %v162 = vadd.f32 %v43, %v161
  %v163 = vpop.f32.mrf.mxu0
  %164 = vmatprep.mubr.f32.mxu0 0.0
  %165 = vmatmul.mubr.f32.gmra.mxu0 %v65
  %v166 = vpop.f32.mrf.mxu0
  %v167 = vadd.f32 %v43, %v166
  %v168 = vpop.f32.mrf.mxu0
  %169 = vmatprep.mubr.f32.mxu0 0.0
  %170 = vmatmul.mubr.f32.gmra.mxu0 %v68
  %v171 = vpop.f32.mrf.mxu0
  %v172 = vadd.f32 %v43, %v171
  %v173 = vpop.f32.mrf.mxu0
  %174 = vdwg.mxu0
  %v175 = vmax.f32 %v137, 0.0
  %v176 = vmax.f32 %v142, 0.0
  %v177 = vmax.f32 %v147, 0.0
  %v178 = vmax.f32 %v152, 0.0
  %v179 = vmax.f32 %v157, 0.0
  %v180 = vmax.f32 %v162, 0.0
  %v181 = vmax.f32 %v167, 0.0
  %v182 = vmax.f32 %v172, 0.0
  %v183 = vld [vmem:[%s3] sm:$0xff]
  %v184 = vld [vmem:[%s3 + $0x8] sm:$0xff]
  %v185 = vld [vmem:[%s4] sm:$0x1]
  %v187 = vlaneseq
  %v188 = vshrl.u32 %v187, 7
  %v189 = vsub.s32 0, %v188
  %v190 = vrot.slane %v185, %v189
  %vm192 = vcmask 130048
  %v194 = vsel %vm192, %v175, 0
  %v197 = vsel %vm192, %v176, 0
  %v200 = vsel %vm192, %v177, 0
  %v203 = vsel %vm192, %v178, 0
  %v206 = vsel %vm192, %v179, 0
  %v209 = vsel %vm192, %v180, 0
  %v212 = vsel %vm192, %v181, 0
  %v215 = vsel %vm192, %v182, 0
  %217 = vmatprep.subr.mxu0 0.0
  %218 = vmatpush1.msra.mxu0 0.0
  %219 = vmatprep.subr.mxu0 0.0
  %220 = vmatpush1.msra.mxu0 0.0
  %221 = vmatprep.subr.mxu0 0.0
  %222 = vmatpush1.msra.mxu0 0.0
  %223 = vmatprep.subr.mxu0 0.0
  %224 = vmatpush1.msra.mxu0 0.0
  %225 = vmatprep.subr.mxu0 0.0
  %226 = vmatpush1.msra.mxu0 0.0
  %227 = vmatprep.subr.mxu0 0.0
  %228 = vmatpush1.msra.mxu0 0.0
  %229 = vmatprep.subr.mxu0 0.0
  %230 = vmatpush1.msra.mxu0 0.0
  %231 = vmatprep.subr.mxu0 0.0
  %232 = vmatpush1.msra.mxu0 0.0
  %233 = vmatprep.subr.mxu0 0.0
  %234 = vmatpush1.msra.mxu0 0.0
  %235 = vmatprep.subr.mxu0 0.0
  %236 = vmatpush1.msra.mxu0 0.0
  %237 = vmatprep.subr.mxu0 0.0
  %238 = vmatpush1.msra.mxu0 0.0
  %239 = vmatprep.subr.mxu0 0.0
  %240 = vmatpush1.msra.mxu0 0.0
  %241 = vmatprep.subr.mxu0 0.0
  %242 = vmatpush1.msra.mxu0 0.0
  %243 = vmatprep.subr.mxu0 0.0
  %244 = vmatpush1.msra.mxu0 0.0
  %245 = vmatprep.subr.mxu0 0.0
  %246 = vmatpush1.msra.mxu0 %v184
  %247 = vmatprep.subr.mxu0 0.0
  %248 = vmatpush1.msra.mxu0 %v183
  %249 = vmatprep.subr.mxu0 0.0
  %250 = vmatpush2.msra.mxu0 0.0
  %251 = vmatprep.subr.mxu0 0.0
  %252 = vmatpush2.msra.mxu0 0.0
  %253 = vmatprep.subr.mxu0 0.0
  %254 = vmatpush2.msra.mxu0 0.0
  %255 = vmatprep.subr.mxu0 0.0
  %256 = vmatpush2.msra.mxu0 0.0
  %257 = vmatprep.subr.mxu0 0.0
  %258 = vmatpush2.msra.mxu0 0.0
  %259 = vmatprep.subr.mxu0 0.0
  %260 = vmatpush2.msra.mxu0 0.0
  %261 = vmatprep.subr.mxu0 0.0
  %262 = vmatpush2.msra.mxu0 0.0
  %263 = vmatprep.subr.mxu0 0.0
  %264 = vmatpush2.msra.mxu0 0.0
  %265 = vmatprep.subr.mxu0 0.0
  %266 = vmatpush2.msra.mxu0 0.0
  %267 = vmatprep.subr.mxu0 0.0
  %268 = vmatpush2.msra.mxu0 0.0
  %269 = vmatprep.subr.mxu0 0.0
  %270 = vmatpush2.msra.mxu0 0.0
  %271 = vmatprep.subr.mxu0 0.0
  %272 = vmatpush2.msra.mxu0 0.0
  %273 = vmatprep.subr.mxu0 0.0
  %274 = vmatpush2.msra.mxu0 0.0
  %275 = vmatprep.subr.mxu0 0.0
  %276 = vmatpush2.msra.mxu0 0.0
  %277 = vmatprep.subr.mxu0 0.0
  %278 = vmatpush2.msra.mxu0 0.0
  %279 = vmatprep.subr.mxu0 0.0
  %280 = vmatpush2.msra.mxu0 0.0
  %281 = vmatprep.mubr.f32.mxu0 0.0
  %282 = vmatmul.mubr.f32.gmra.mxu0 %v194
  %v283 = vpop.f32.mrf.mxu0
  %v284 = vadd.f32 %v190, %v283
  %v285 = vpop.f32.mrf.mxu0
  %286 = vmatprep.mubr.f32.mxu0 0.0
  %287 = vmatmul.mubr.f32.gmra.mxu0 %v197
  %v288 = vpop.f32.mrf.mxu0
  %v289 = vadd.f32 %v190, %v288
  %v290 = vpop.f32.mrf.mxu0
  %291 = vmatprep.mubr.f32.mxu0 0.0
  %292 = vmatmul.mubr.f32.gmra.mxu0 %v200
  %v293 = vpop.f32.mrf.mxu0
  %v294 = vadd.f32 %v190, %v293
  %v295 = vpop.f32.mrf.mxu0
  %296 = vmatprep.mubr.f32.mxu0 0.0
  %297 = vmatmul.mubr.f32.gmra.mxu0 %v203
  %v298 = vpop.f32.mrf.mxu0
  %v299 = vadd.f32 %v190, %v298
  %v300 = vpop.f32.mrf.mxu0
  %301 = vmatprep.mubr.f32.mxu0 0.0
  %302 = vmatmul.mubr.f32.gmra.mxu0 %v206
  %v303 = vpop.f32.mrf.mxu0
  %v304 = vadd.f32 %v190, %v303
  %v305 = vpop.f32.mrf.mxu0
  %306 = vmatprep.mubr.f32.mxu0 0.0
  %307 = vmatmul.mubr.f32.gmra.mxu0 %v209
  %v308 = vpop.f32.mrf.mxu0
  %v309 = vadd.f32 %v190, %v308
  %v310 = vpop.f32.mrf.mxu0
  %311 = vmatprep.mubr.f32.mxu0 0.0
  %312 = vmatmul.mubr.f32.gmra.mxu0 %v212
  %v313 = vpop.f32.mrf.mxu0
  %v314 = vadd.f32 %v190, %v313
  %v315 = vpop.f32.mrf.mxu0
  %316 = vmatprep.mubr.f32.mxu0 0.0
  %317 = vmatmul.mubr.f32.gmra.mxu0 %v215
  %v318 = vpop.f32.mrf.mxu0
  %v319 = vadd.f32 %v190, %v318
  %v320 = vpop.f32.mrf.mxu0
  %321 = vdwg.mxu0
  %v322 = vmax.f32 %v284, 0.0
  %v323 = vmax.f32 %v289, 0.0
  %v324 = vmax.f32 %v294, 0.0
  %v325 = vmax.f32 %v299, 0.0
  %v326 = vmax.f32 %v304, 0.0
  %v327 = vmax.f32 %v309, 0.0
  %v328 = vmax.f32 %v314, 0.0
  %v329 = vmax.f32 %v319, 0.0
  %v330 = vld [vmem:[%s5] sm:$0xff]
  %v331 = vld [vmem:[%s6] sm:$0x1]
  %v333 = vlaneseq
  %v334 = vshrl.u32 %v333, 7
  %v335 = vsub.s32 0, %v334
  %v336 = vrot.slane %v331, %v335
  %vm338 = vcmask 64512
  %v340 = vsel %vm338, %v322, 0
  %v343 = vsel %vm338, %v323, 0
  %v346 = vsel %vm338, %v324, 0
  %v349 = vsel %vm338, %v325, 0
  %v352 = vsel %vm338, %v326, 0
  %v355 = vsel %vm338, %v327, 0
  %v358 = vsel %vm338, %v328, 0
  %v361 = vsel %vm338, %v329, 0
  %363 = vmatprep.subr.mxu0 0.0
  %364 = vmatpush1.msra.mxu0 0.0
  %365 = vmatprep.subr.mxu0 0.0
  %366 = vmatpush1.msra.mxu0 0.0
  %367 = vmatprep.subr.mxu0 0.0
  %368 = vmatpush1.msra.mxu0 0.0
  %369 = vmatprep.subr.mxu0 0.0
  %370 = vmatpush1.msra.mxu0 0.0
  %371 = vmatprep.subr.mxu0 0.0
  %372 = vmatpush1.msra.mxu0 0.0
  %373 = vmatprep.subr.mxu0 0.0
  %374 = vmatpush1.msra.mxu0 0.0
  %375 = vmatprep.subr.mxu0 0.0
  %376 = vmatpush1.msra.mxu0 0.0
  %377 = vmatprep.subr.mxu0 0.0
  %378 = vmatpush1.msra.mxu0 0.0
  %379 = vmatprep.subr.mxu0 0.0
  %380 = vmatpush1.msra.mxu0 0.0
  %381 = vmatprep.subr.mxu0 0.0
  %382 = vmatpush1.msra.mxu0 0.0
  %383 = vmatprep.subr.mxu0 0.0
  %384 = vmatpush1.msra.mxu0 0.0
  %385 = vmatprep.subr.mxu0 0.0
  %386 = vmatpush1.msra.mxu0 0.0
  %387 = vmatprep.subr.mxu0 0.0
  %388 = vmatpush1.msra.mxu0 0.0
  %389 = vmatprep.subr.mxu0 0.0
  %390 = vmatpush1.msra.mxu0 0.0
  %391 = vmatprep.subr.mxu0 0.0
  %392 = vmatpush1.msra.mxu0 0.0
  %393 = vmatprep.subr.mxu0 0.0
  %394 = vmatpush1.msra.mxu0 %v330
  %395 = vmatprep.subr.mxu0 0.0
  %396 = vmatpush2.msra.mxu0 0.0
  %397 = vmatprep.subr.mxu0 0.0
  %398 = vmatpush2.msra.mxu0 0.0
  %399 = vmatprep.subr.mxu0 0.0
  %400 = vmatpush2.msra.mxu0 0.0
  %401 = vmatprep.subr.mxu0 0.0
  %402 = vmatpush2.msra.mxu0 0.0
  %403 = vmatprep.subr.mxu0 0.0
  %404 = vmatpush2.msra.mxu0 0.0
  %405 = vmatprep.subr.mxu0 0.0
  %406 = vmatpush2.msra.mxu0 0.0
  %407 = vmatprep.subr.mxu0 0.0
  %408 = vmatpush2.msra.mxu0 0.0
  %409 = vmatprep.subr.mxu0 0.0
  %410 = vmatpush2.msra.mxu0 0.0
  %411 = vmatprep.subr.mxu0 0.0
  %412 = vmatpush2.msra.mxu0 0.0
  %413 = vmatprep.subr.mxu0 0.0
  %414 = vmatpush2.msra.mxu0 0.0
  %415 = vmatprep.subr.mxu0 0.0
  %416 = vmatpush2.msra.mxu0 0.0
  %417 = vmatprep.subr.mxu0 0.0
  %418 = vmatpush2.msra.mxu0 0.0
  %419 = vmatprep.subr.mxu0 0.0
  %420 = vmatpush2.msra.mxu0 0.0
  %421 = vmatprep.subr.mxu0 0.0
  %422 = vmatpush2.msra.mxu0 0.0
  %423 = vmatprep.subr.mxu0 0.0
  %424 = vmatpush2.msra.mxu0 0.0
  %425 = vmatprep.subr.mxu0 0.0
  %426 = vmatpush2.msra.mxu0 0.0
  %427 = vmatprep.mubr.f32.mxu0 0.0
  %428 = vmatmul.mubr.f32.gmra.mxu0 %v340
  %v429 = vpop.f32.mrf.mxu0
  %v430 = vadd.f32 %v336, %v429
  %v431 = vpop.f32.mrf.mxu0
  %432 = vmatprep.mubr.f32.mxu0 0.0
  %433 = vmatmul.mubr.f32.gmra.mxu0 %v343
  %v434 = vpop.f32.mrf.mxu0
  %v435 = vadd.f32 %v336, %v434
  %v436 = vpop.f32.mrf.mxu0
  %437 = vmatprep.mubr.f32.mxu0 0.0
  %438 = vmatmul.mubr.f32.gmra.mxu0 %v346
  %v439 = vpop.f32.mrf.mxu0
  %v440 = vadd.f32 %v336, %v439
  %v441 = vpop.f32.mrf.mxu0
  %442 = vmatprep.mubr.f32.mxu0 0.0
  %443 = vmatmul.mubr.f32.gmra.mxu0 %v349
  %v444 = vpop.f32.mrf.mxu0
  %v445 = vadd.f32 %v336, %v444
  %v446 = vpop.f32.mrf.mxu0
  %447 = vmatprep.mubr.f32.mxu0 0.0
  %448 = vmatmul.mubr.f32.gmra.mxu0 %v352
  %v449 = vpop.f32.mrf.mxu0
  %v450 = vadd.f32 %v336, %v449
  %v451 = vpop.f32.mrf.mxu0
  %452 = vmatprep.mubr.f32.mxu0 0.0
  %453 = vmatmul.mubr.f32.gmra.mxu0 %v355
  %v454 = vpop.f32.mrf.mxu0
  %v455 = vadd.f32 %v336, %v454
  %v456 = vpop.f32.mrf.mxu0
  %457 = vmatprep.mubr.f32.mxu0 0.0
  %458 = vmatmul.mubr.f32.gmra.mxu0 %v358
  %v459 = vpop.f32.mrf.mxu0
  %v460 = vadd.f32 %v336, %v459
  %v461 = vpop.f32.mrf.mxu0
  %462 = vmatprep.mubr.f32.mxu0 0.0
  %463 = vmatmul.mubr.f32.gmra.mxu0 %v361
  %v464 = vpop.f32.mrf.mxu0
  %v465 = vadd.f32 %v336, %v464
  %v466 = vpop.f32.mrf.mxu0
  %467 = vdwg.mxu0
  %vm468 = vcmask 31744
  %469 = vst.msk [vmem:[%s7] sm:$0xff] %vm468, %v430
  %470 = vst.msk [vmem:[%s7 + $0x8] sm:$0xff] %vm468, %v435
  %471 = vst.msk [vmem:[%s7 + $0x10] sm:$0xff] %vm468, %v440
  %472 = vst.msk [vmem:[%s7 + $0x18] sm:$0xff] %vm468, %v445
  %473 = vst.msk [vmem:[%s7 + $0x20] sm:$0xff] %vm468, %v450
  %474 = vst.msk [vmem:[%s7 + $0x28] sm:$0xff] %vm468, %v455
  %475 = vst.msk [vmem:[%s7 + $0x30] sm:$0xff] %vm468, %v460
  %476 = vst.msk [vmem:[%s7 + $0x38] sm:$0xff] %vm468, %v465
  // Predicated region
  $region30: #{_mlp_readout_impl.1} parent=0 // pred_check
    _
  $region31: #{_mlp_readout_impl.1} parent=0 // pred_check_branch
    %478 = sbr.rel (0) target = $region33
  $region32: #{_mlp_readout_impl.1} parent=0 // pred_region
    _
  $region33: #{_mlp_readout_impl.1} parent=0 // pred_fallthru
    _
  // Predicated region
  $region34: #{_mlp_readout_impl.1} parent=0 // pred_check
    _
  $region35: #{_mlp_readout_impl.1} parent=0 // pred_check_branch
    %480 = sbr.rel (0) target = $region37
  $region36: #{_mlp_readout_impl.1} parent=0 // pred_region
    _
  $region37: #{_mlp_readout_impl.1} parent=0 // pred_fallthru
    _

</llo_original>
